<compile_context>
chip_gen: v7x
topology: tpu7x:2x2x1
jax: 0.10.0
libtpu: 0.0.40
codegen_flags: <defaults>
</compile_context>

<pallas_src>
import jax
import jax.numpy as jnp
from jax.experimental import pallas as pl
from jax.experimental.pallas import tpu as pltpu

_LANES = 128
_SUBLANES = 8


def _softmax_stable_kernel(x_ref, o_ref, m_ref, l_ref):
    """Two-phase online softmax over a padded (rows, 128) slab.

    grid = (2, num_tiles): phase 0 accumulates running max / rescaled sum,
    phase 1 normalizes each tile.  x_ref/o_ref: (tile_rows, 128) f32 tiles;
    m_ref/l_ref: (1, 1) f32 VMEM scratch persisting across the grid.
    """
    phase = pl.program_id(0)
    tile = pl.program_id(1)

    @pl.when(jnp.logical_and(phase == 0, tile == 0))
    def _init():
        m_ref[...] = jnp.full(m_ref.shape, -jnp.inf, m_ref.dtype)
        l_ref[...] = jnp.zeros_like(l_ref)

    @pl.when(phase == 0)
    def _accumulate():
        x = x_ref[...]
        m_old = m_ref[...]                                     # (1, 1)
        m_new = jnp.maximum(m_old, jnp.max(x, keepdims=True))  # running max
        l_ref[...] = (l_ref[...] * jnp.exp(m_old - m_new)      # rescale old sum
                      + jnp.sum(jnp.exp(x - m_new), keepdims=True))
        m_ref[...] = m_new

    @pl.when(phase == 1)
    def _normalize():
        e = jnp.exp(x_ref[...] - m_ref[...])          # EUP exp, (tile_rows, 128)
        denom = l_ref[...]                            # (1, 1) global sum
        r = pl.reciprocal(denom, approx=True)         # EUP vrcp (otherwise-idle slot)
        r = r * (2.0 - denom * r)                     # one Newton step -> full f32 accuracy
        o_ref[...] = e * r


def soft_max_stable(x, *, tile_rows=1024):
    """Stable softmax over dim 0 of a 1-D vector, computed in a Pallas TPU kernel."""
    assert x.ndim == 1, "module's forward is defined on a 1-D tensor"
    n = x.shape[0]
    x = x.astype(jnp.float32)

    def cdiv(a, b):
        return -(-a // b)

    assert tile_rows % _SUBLANES == 0, "tile_rows must be a multiple of 8"
    block_elems = tile_rows * _LANES
    if n <= block_elems:
        # Single tile: pad to a full (8k, 128) slab and cover it with one block.
        padded = cdiv(n, _SUBLANES * _LANES) * (_SUBLANES * _LANES)
        tile_rows = padded // _LANES
    else:
        padded = cdiv(n, block_elems) * block_elems
    rows = padded // _LANES
    num_tiles = rows // tile_rows

    # -inf padding: never wins the max, contributes exp(-inf) == 0 to the sum.
    pad = padded - n
    if pad:
        x = jnp.pad(x, (0, pad), constant_values=-jnp.inf)
    x2 = x.reshape(rows, _LANES)                      # sublane/lane-dense layout

    out2 = pl.pallas_call(
        _softmax_stable_kernel,
        out_shape=jax.ShapeDtypeStruct((rows, _LANES), jnp.float32),
        grid_spec=pltpu.PrefetchScalarGridSpec(
            num_scalar_prefetch=0,
            grid=(2, num_tiles),
            in_specs=[pl.BlockSpec((tile_rows, _LANES), lambda p, i: (i, 0))],
            # Phase 0 parks on output block 0 (never written there, never
            # flushed -- the block index only changes inside phase 1); phase 1
            # walks all blocks, so each block is written exactly once and only
            # correct data is flushed to HBM (lane-dense, unmasked vst).
            out_specs=pl.BlockSpec((tile_rows, _LANES), lambda p, i: (i * p, 0)),
            scratch_shapes=[pltpu.VMEM((1, 1), jnp.float32),   # running max m
                            pltpu.VMEM((1, 1), jnp.float32)],  # running sum l
        ),
        compiler_params=pltpu.CompilerParams(
            dimension_semantics=("arbitrary", "arbitrary")),
        cost_estimate=pl.CostEstimate(
            flops=6 * padded,               # sub/max/mul/add, two passes
            transcendentals=2 * padded,     # exp in both phases
            bytes_accessed=3 * 4 * padded,  # read x twice + write y once (f32)
        ),
    )(x2)

    return out2.reshape(padded)[:n]


if __name__ == "__main__":
    key = jax.random.PRNGKey(0)
    k_small, k_multi = jax.random.split(key)

    def ref_softmax(v):
        c = jnp.max(v)
        e = jnp.exp(v - c)
        return e / jnp.sum(e, axis=0)

    # Small 1-D input consistent with the module's forward (seq = 8).
    # NOTE: at this size the kernel is pure launch overhead (plain
    # jax.nn.softmax would be faster); the Pallas path pays off at
    # HBM-roofline sizes, which the tiled grid below supports.
    x_small = jax.random.normal(k_small, (8,), dtype=jnp.float32)
    y_small = soft_max_stable(x_small)
    jax.block_until_ready(y_small)
    assert jnp.allclose(y_small, ref_softmax(x_small), atol=1e-6, rtol=1e-5), (
        y_small, ref_softmax(x_small))

    # Second small check exercising the multi-tile online-softmax path
    # (padding + running-max/sum accumulation across 3 tiles, grid=(2, 3)).
    x_multi = jax.random.normal(k_multi, (2500,), dtype=jnp.float32) * 4.0
    y_multi = soft_max_stable(x_multi, tile_rows=8)
    jax.block_until_ready(y_multi)
    assert jnp.allclose(y_multi, ref_softmax(x_multi), atol=1e-7, rtol=1e-5), (
        y_multi, ref_softmax(x_multi))

    print("KERNEL_OK")
</pallas_src>

<mosaic_0001>
module attributes {stable_mosaic.version = 11 : i64} {
  func.func @_softmax_stable_kernel(%arg0: i32, %arg1: i32, %arg2: memref<8x128xf32, #tpu.memory_space<vmem>>, %arg3: memref<8x128xf32, #tpu.memory_space<vmem>>, %arg4: memref<1x1xf32, #tpu.memory_space<vmem>>, %arg5: memref<1x1xf32, #tpu.memory_space<vmem>>) attributes {dimension_semantics = [#tpu.dimension_semantics<arbitrary>, #tpu.dimension_semantics<arbitrary>], iteration_bounds = array<i64: 2, 1>, scalar_prefetch = 0 : i64, scratch_operands = 2 : i64, tpu.core_type = #tpu.core_type<tc>, window_params = [{transform_indices = @transform_0, window_bounds = array<i64: 8, 128>}, {transform_indices = @transform_1, window_bounds = array<i64: 8, 128>}]} {
    %c0_i32 = arith.constant 0 : i32
    %0 = arith.cmpi eq, %arg0, %c0_i32 : i32
    %c0_i32_0 = arith.constant 0 : i32
    %1 = arith.cmpi eq, %arg1, %c0_i32_0 : i32
    %2 = arith.andi %0, %1 : i1
    %3 = arith.extui %2 : i1 to i32
    %c0_i32_1 = arith.constant 0 : i32
    %4 = arith.cmpi ne, %3, %c0_i32_1 : i32
    scf.if %4 {
      %cst = arith.constant 0xFF800000 : f32
      %11 = vector.broadcast %cst : f32 to vector<1x1xf32>
      %c0 = arith.constant 0 : index
      %c0_5 = arith.constant 0 : index
      %12 = vector.load %arg4[%c0, %c0_5] : memref<1x1xf32, #tpu.memory_space<vmem>>, vector<1x1xf32>
      tpu.vector_store %arg4[%c0, %c0_5], %11 {strides = array<i32>} : memref<1x1xf32, #tpu.memory_space<vmem>>, vector<1x1xf32>,
      %cst_6 = arith.constant 0.000000e+00 : f32
      %13 = vector.broadcast %cst_6 : f32 to vector<1x1xf32>
      %c0_7 = arith.constant 0 : index
      %c0_8 = arith.constant 0 : index
      %14 = vector.load %arg5[%c0_7, %c0_8] : memref<1x1xf32, #tpu.memory_space<vmem>>, vector<1x1xf32>
      tpu.vector_store %arg5[%c0_7, %c0_8], %13 {strides = array<i32>} : memref<1x1xf32, #tpu.memory_space<vmem>>, vector<1x1xf32>,
    } else {
    }
    %c0_i32_2 = arith.constant 0 : i32
    %5 = arith.cmpi eq, %arg0, %c0_i32_2 : i32
    %6 = arith.extui %5 : i1 to i32
    %c0_i32_3 = arith.constant 0 : i32
    %7 = arith.cmpi ne, %6, %c0_i32_3 : i32
    scf.if %7 {
      %c0 = arith.constant 0 : index
      %c0_5 = arith.constant 0 : index
      %11 = vector.load %arg2[%c0, %c0_5] : memref<8x128xf32, #tpu.memory_space<vmem>>, vector<8x128xf32>
      %c0_6 = arith.constant 0 : index
      %c0_7 = arith.constant 0 : index
      %12 = vector.load %arg4[%c0_6, %c0_7] : memref<1x1xf32, #tpu.memory_space<vmem>>, vector<1x1xf32>
      %13 = vector.shape_cast %11 : vector<8x128xf32> to vector<1x8x128xf32>
      %cst = arith.constant dense<0xFF800000> : vector<1xf32>
      %14 = vector.multi_reduction <maximumf>, %13, %cst [1, 2] : vector<1x8x128xf32> to vector<1xf32>
      %15 = vector.shape_cast %14 : vector<1xf32> to vector<1x1x1xf32>
      %16 = vector.extract %15[0, 0, 0] : f32 from vector<1x1x1xf32>
      %17 = vector.broadcast %16 : f32 to vector<1x1xf32>
      %18 = arith.maximumf %12, %17 : vector<1x1xf32>
      %c0_8 = arith.constant 0 : index
      %c0_9 = arith.constant 0 : index
      %19 = vector.load %arg5[%c0_8, %c0_9] : memref<1x1xf32, #tpu.memory_space<vmem>>, vector<1x1xf32>
      %20 = arith.subf %12, %18 : vector<1x1xf32>
      %21 = math.exp %20 : vector<1x1xf32>
      %22 = arith.mulf %19, %21 : vector<1x1xf32>
      %23 = vector.broadcast %18 : vector<1x1xf32> to vector<8x128xf32>
      %24 = arith.subf %11, %23 : vector<8x128xf32>
      %25 = math.exp %24 : vector<8x128xf32>
      %26 = vector.shape_cast %25 : vector<8x128xf32> to vector<1x8x128xf32>
      %cst_10 = arith.constant dense<0.000000e+00> : vector<1xf32>
      %27 = vector.multi_reduction <add>, %26, %cst_10 [1, 2] : vector<1x8x128xf32> to vector<1xf32>
      %28 = vector.shape_cast %27 : vector<1xf32> to vector<1x1x1xf32>
      %29 = vector.extract %28[0, 0, 0] : f32 from vector<1x1x1xf32>
      %30 = vector.broadcast %29 : f32 to vector<1x1xf32>
      %31 = arith.addf %22, %30 : vector<1x1xf32>
      %c0_11 = arith.constant 0 : index
      %c0_12 = arith.constant 0 : index
      %32 = vector.load %arg5[%c0_11, %c0_12] : memref<1x1xf32, #tpu.memory_space<vmem>>, vector<1x1xf32>
      tpu.vector_store %arg5[%c0_11, %c0_12], %31 {strides = array<i32>} : memref<1x1xf32, #tpu.memory_space<vmem>>, vector<1x1xf32>,
      %c0_13 = arith.constant 0 : index
      %c0_14 = arith.constant 0 : index
      %33 = vector.load %arg4[%c0_13, %c0_14] : memref<1x1xf32, #tpu.memory_space<vmem>>, vector<1x1xf32>
      tpu.vector_store %arg4[%c0_13, %c0_14], %18 {strides = array<i32>} : memref<1x1xf32, #tpu.memory_space<vmem>>, vector<1x1xf32>,
    } else {
    }
    %c1_i32 = arith.constant 1 : i32
    %8 = arith.cmpi eq, %arg0, %c1_i32 : i32
    %9 = arith.extui %8 : i1 to i32
    %c0_i32_4 = arith.constant 0 : i32
    %10 = arith.cmpi ne, %9, %c0_i32_4 : i32
    scf.if %10 {
      %c0 = arith.constant 0 : index
      %c0_5 = arith.constant 0 : index
      %11 = vector.load %arg2[%c0, %c0_5] : memref<8x128xf32, #tpu.memory_space<vmem>>, vector<8x128xf32>
      %c0_6 = arith.constant 0 : index
      %c0_7 = arith.constant 0 : index
      %12 = vector.load %arg4[%c0_6, %c0_7] : memref<1x1xf32, #tpu.memory_space<vmem>>, vector<1x1xf32>
      %13 = vector.broadcast %12 : vector<1x1xf32> to vector<8x128xf32>
      %14 = arith.subf %11, %13 : vector<8x128xf32>
      %15 = math.exp %14 : vector<8x128xf32>
      %c0_8 = arith.constant 0 : index
      %c0_9 = arith.constant 0 : index
      %16 = vector.load %arg5[%c0_8, %c0_9] : memref<1x1xf32, #tpu.memory_space<vmem>>, vector<1x1xf32>
      %17 = tpu.reciprocal %16 {approx = true} : vector<1x1xf32> -> vector<1x1xf32>
      %18 = arith.mulf %16, %17 : vector<1x1xf32>
      %cst = arith.constant 2.000000e+00 : f32
      %19 = vector.broadcast %cst : f32 to vector<1x1xf32>
      %20 = arith.subf %19, %18 : vector<1x1xf32>
      %21 = arith.mulf %17, %20 : vector<1x1xf32>
      %22 = vector.broadcast %21 : vector<1x1xf32> to vector<8x128xf32>
      %23 = arith.mulf %15, %22 : vector<8x128xf32>
      %c0_10 = arith.constant 0 : index
      %c0_11 = arith.constant 0 : index
      %24 = vector.load %arg3[%c0_10, %c0_11] : memref<8x128xf32, #tpu.memory_space<vmem>>, vector<8x128xf32>
      tpu.vector_store %arg3[%c0_10, %c0_11], %23 {strides = array<i32>} : memref<8x128xf32, #tpu.memory_space<vmem>>, vector<8x128xf32>,
    } else {
    }
    return
  }
  func.func @transform_0(%arg0: i32, %arg1: i32) -> (i32, i32) {
    %c0_i32 = arith.constant 0 : i32
    %c0_i32_0 = arith.constant 0 : i32
    return %arg1, %c0_i32 : i32, i32
  }
  func.func @transform_1(%arg0: i32, %arg1: i32) -> (i32, i32) {
    %0 = arith.muli %arg1, %arg0 : i32
    %c0_i32 = arith.constant 0 : i32
    %c0_i32_0 = arith.constant 0 : i32
    return %0, %c0_i32 : i32, i32
  }
}

</mosaic_0001>

<llo_original>
// kernel: tpu_custom_call.1
$region0: #{tpu_custom_call.1}
  #allocation0 [shape = 'u32[]', space=smem, size = 0x4, offset = 0x4, fixed_abs, tag = 'smem constant byte address 0x4 - core index']
  #allocation1 [shape = 'u32[144,128]{1,0:T(1,128)}', space=vmem, size = 0x12000, scoped, tag = 'internal scratch']
  #allocation2 [shape = 'f32[1,1]{1,0:T(1,128)}', space=vmem, size = 0x200, scoped, tag = 'scratch operand']
  #allocation3 [shape = 'f32[1,1]{1,0:T(1,128)}', space=vmem, size = 0x200, scoped, tag = 'scratch operand']
  %s0 = inlined_call_operand.hbm [shape: f32[8,128], index: 0, kind: input, shape index: {}]
  %s1 = inlined_call_operand.hbm [shape: f32[8,128], index: 1, kind: output, shape index: {}]
  %s2 = sld [smem:[#allocation0]]
  $region53: #{tpu_custom_call.1} parent=0
    _
  %s4 = ssub.s32 1, %s2
  %s5 = scalar_select 0, %s4, %s2
  $region1: #{tpu_custom_call.1} parent=0
    #allocation4 [shape = 'u8[4096]{0}', space=vmem, size = 0x1000, scoped, tag = 'input window, operand 0, single buffered']
    #allocation5 [shape = 's32[2]{0}', space=sflag, size = 0x8, scoped, tag = 'scoped memory for tpu_custom_call.1']
    #allocation6 [shape = 's32[2]{0}', space=sflag, size = 0x8, scoped, tag = 'scoped memory for tpu_custom_call.1']
    #allocation7 [shape = 'u8[8192]{0}', space=vmem, size = 0x2000, scoped, tag = 'output window, operand 0']
    %6 = vsyncpa [#allocation5], 0
    %7 = vsyncpa [#allocation6], 0
    %s8 = scalar_lea.sflag [#allocation6], 1
    %9 = vsyncpa %s8, 0
    loop: start=0, step=1, limit=4
    $region2: #{tpu_custom_call.1} parent=1 // loop_pre_header
      _
    $region3: #{tpu_custom_call.1} parent=1 // loop_header
      %s11 = sphi 0, %s15
      %p12 = scmp.ge.s32.totalorder %s11, 4
      %s18 = sphi 0, %s30
      %s19 = sphi 0, %s26
      %s20 = sphi 0, %s18
      %s21 = sphi 0, %s19
      %s22 = sphi 0, %s20
      %s23 = sphi 0, %s21
      %s33 = sphi 0, %s35
      %s36 = sphi 0, %s33
      %s37 = sphi 0, %s36
      %s53 = sphi 0, %s37
      %s61 = sphi 0, %s63
      %s64 = sphi 0, %s61
      %s65 = sphi 0, %s64
      %s81 = sphi 0, %s65
    $region4: #{tpu_custom_call.1} parent=1 // loop_header_branch
      %14 = sbr.rel (%p12) target = $region8
    $region5: #{tpu_custom_call.1} parent=1 // loop_body
      %s16 = ssub.s32 %s11, 1
      %s17 = ssub.s32 %s11, 2
      %s24 = sadd.s32 1, %s19
      %p25 = scmp.ge.s32.totalorder %s24, 1
      %s26 = scalar_select %p25, 0, %s24
      %s27 = sadd.s32 1, %s18
      %s28 = scalar_select %p25, %s27, %s18
      %p29 = scmp.ge.s32.totalorder %s28, 2
      %s30 = scalar_select %p29, 0, %s28
      %s31 = ssub.s32 %s19, %s26
      %p32 = scmp.eq.s32.totalorder %s31, 0
      %s34 = sadd.s32 %s33, 1
      %s35 = scalar_select %p32, %s33, %s34
      %p38 = pneg %p32
      %p39 = scmp.eq.s32.totalorder %s11, 1
      %p40 = por %p38, %p39
      %p41 = scmp.ne.s32.totalorder %s33, %s36
      %p42 = scmp.eq.s32.totalorder %s11, 0
      %p43 = por %p41, %p42
      %p44 = scmp.ne.s32.totalorder %s33, %s36
      %p45 = scmp.eq.s32.totalorder %s16, 1
      %p46 = por %p44, %p45
      %p47 = scmp.ne.s32.totalorder %s36, %s37
      %p48 = scmp.eq.s32.totalorder %s16, 0
      %p49 = por %p47, %p48
      %p50 = scmp.ne.s32.totalorder %s36, %s37
      %p51 = scmp.eq.s32.totalorder %s17, 1
      %p52 = por %p50, %p51
      %p54 = scmp.ne.s32.totalorder %s37, %s53
      %p55 = scmp.eq.s32.totalorder %s17, 0
      %p56 = por %p54, %p55
      %s57 = smul.u32 %s19, %s18
      %s58 = smul.u32 %s26, %s30
      %s59 = ssub.s32 %s57, %s58
      %p60 = scmp.eq.s32.totalorder %s59, 0
      %s62 = sadd.s32 %s61, 1
      %s63 = scalar_select %p60, %s61, %s62
      %p66 = pneg %p60
      %p67 = scmp.eq.s32.totalorder %s11, 1
      %p68 = por %p66, %p67
      %p69 = scmp.ne.s32.totalorder %s61, %s64
      %p70 = scmp.eq.s32.totalorder %s11, 0
      %p71 = por %p69, %p70
      %p72 = scmp.ne.s32.totalorder %s61, %s64
      %p73 = scmp.eq.s32.totalorder %s16, 1
      %p74 = por %p72, %p73
      %p75 = scmp.ne.s32.totalorder %s64, %s65
      %p76 = scmp.eq.s32.totalorder %s16, 0
      %p77 = por %p75, %p76
      %p78 = scmp.ne.s32.totalorder %s64, %s65
      %p79 = scmp.eq.s32.totalorder %s17, 1
      %p80 = por %p78, %p79
      %p82 = scmp.ne.s32.totalorder %s65, %s81
      %p83 = scmp.eq.s32.totalorder %s17, 0
      %p84 = por %p82, %p83
      %p85 = scmp.le.s32.totalorder 1, %s11
      %p86 = scmp.lt.s32.totalorder %s11, 3
      %p87 = pnand %p85, %p86
      %p88 = pneg %p87
      // Predicated region
      $region9: #{tpu_custom_call.1} parent=5 // pred_check
        _
      $region10: #{tpu_custom_call.1} parent=5 // pred_check_branch
        %90 = sbr.rel (%p87) target = $region12
      $region11: #{tpu_custom_call.1} parent=5 // pred_region
        %s91 = ssub.s32 %s11, 1
        // Predicated region
        $region13: #{tpu_custom_call.1} parent=11 // pred_check
          %p92 = pneg %p49
        $region14: #{tpu_custom_call.1} parent=11 // pred_check_branch
          %94 = sbr.rel (%p92) target = $region16
        $region15: #{tpu_custom_call.1} parent=11 // pred_region
          %s96 = ssub.s32 128, 128
          %97 = vsyncadd [#allocation5], %s96
          %s98 = smul.addr %s21, 128
          %s99 = scalar_lea.hbm %s0, %s98
          %s101 = sshll.u32 [#allocation4], 4
          %s102 = int_to_ptr.vmem [resolvable:$true] %s101
          %104 = dma.hbm_to_vmem [thread:$0]  %s99, 128, %s102, [#allocation5]
        $region16: #{tpu_custom_call.1} parent=11 // pred_fallthru
          _
      $region12: #{tpu_custom_call.1} parent=5 // pred_fallthru
        _
      %p105 = scmp.lt.s32.totalorder %s11, 2
      // Predicated region
      $region17: #{tpu_custom_call.1} parent=5 // pred_check
        %p106 = pneg %p105
      $region18: #{tpu_custom_call.1} parent=5 // pred_check_branch
        %108 = sbr.rel (%p106) target = $region20
      $region19: #{tpu_custom_call.1} parent=5 // pred_region
        _
      $region20: #{tpu_custom_call.1} parent=5 // pred_fallthru
        _
      %p109 = scmp.le.s32.totalorder 1, %s11
      %p110 = scmp.lt.s32.totalorder %s11, 3
      %p111 = pnand %p109, %p110
      %p112 = pneg %p111
      // Predicated region
      $region21: #{tpu_custom_call.1} parent=5 // pred_check
        _
      $region22: #{tpu_custom_call.1} parent=5 // pred_check_branch
        %114 = sbr.rel (%p111) target = $region24
      $region23: #{tpu_custom_call.1} parent=5 // pred_region
        %s115 = ssub.s32 %s11, 1
        // Predicated region
        $region25: #{tpu_custom_call.1} parent=23 // pred_check
          %p116 = pneg %p49
        $region26: #{tpu_custom_call.1} parent=23 // pred_check_branch
          %118 = sbr.rel (%p116) target = $region28
        $region27: #{tpu_custom_call.1} parent=23 // pred_region
          %119 = dma.done [#allocation5], 128
        $region28: #{tpu_custom_call.1} parent=23 // pred_fallthru
          _
        %p120 = pneg %p49
        %p121 = pneg %p46
        %p122 = pneg %p77
        %p123 = pneg %p74
        %s124 = sand.u32 %s64, 1
        %s125 = scalar_lea.sflag [#allocation6], %s124
        %s126 = sand.u32 %s64, 1
        %s127 = smul.addr %s126, 8
        %s128 = scalar_lea.vmem [#allocation7], %s127
        %s129 = smul.u32 %s21, %s20
        %p130 = scmp.eq.s32.totalorder %s20, 0
        %p131 = scmp.eq.s32.totalorder %s21, 0
        %p132 = pnand %p130, %p131
        %p133 = pneg %p132
        // Predicated region
        $region29: #{tpu_custom_call.1} parent=23 // pred_check
          _
        $region30: #{tpu_custom_call.1} parent=23 // pred_check_branch
          %135 = sbr.rel (%p132) target = $region32
        $region31: #{tpu_custom_call.1} parent=23 // pred_region
          %vm136 = vcmask 0
          %137 = vst.msk [vmem:[#allocation2] sm:$0x1] %vm136, -inf
          %138 = vst.msk [vmem:[#allocation3] sm:$0x1] %vm136, 0.0
        $region32: #{tpu_custom_call.1} parent=23 // pred_fallthru
          _
        // Predicated region
        $region33: #{tpu_custom_call.1} parent=23 // pred_check
          %p139 = pneg %p130
        $region34: #{tpu_custom_call.1} parent=23 // pred_check_branch
          %141 = sbr.rel (%p139) target = $region36
        $region35: #{tpu_custom_call.1} parent=23 // pred_region
          %v142 = vld [vmem:[#allocation4] sm:$0xff]
          %v143 = vld [vmem:[#allocation2] sm:$0x1]
          %144 = vmax.xlane.f32.xlu0 %v142
          %v145 = vpop.xlane.xlu0 %144
          %v146 = vrot.slane %v145, 4
          %v147 = vmax.f32 %v145, %v146
          %v148 = vrot.slane %v147, 2
          %v149 = vmax.f32 %v147, %v148
          %v150 = vrot.slane %v149, 1
          %v151 = vmax.f32 %v149, %v150
          %s152 = vtos %v151
          %v153 = vstv %s152
          %v154 = vmax.f32 %v143, %v153
          %v155 = vld [vmem:[#allocation3] sm:$0x1]
          %v156 = vsub.f32 %v143, %v154
          %v157 = vmul.f32 %v156, 1.442695
          %v158 = vpow.pop %v157
          %v159 = vmul.f32 %v155, %v158
          %v161 = vlaneseq
          %v162 = vshrl.u32 %v161, 7
          %v163 = vsub.s32 0, %v162
          %v164 = vrot.slane %v154, %v163
          %165 = vset.pattern.permute.xlu0 0
          %166 = vperm.xlu0 %165, %v164
          %v167 = vpop.permute.xlu0 %166
          %v169 = vsub.f32 %v142, %v167
          %v170 = vmul.f32 %v169, 1.442695
          %v171 = vpow.pop %v170
          %172 = vadd.xlane.f32.xlu0 %v171
          %v173 = vpop.xlane.xlu0 %172
          %v174 = vrot.slane %v173, 4
          %v175 = vadd.f32 %v173, %v174
          %v176 = vrot.slane %v175, 2
          %v177 = vadd.f32 %v175, %v176
          %v178 = vrot.slane %v177, 1
          %v179 = vadd.f32 %v177, %v178
          %s180 = vtos %v179
          %v181 = vstv %s180
          %v182 = vadd.f32 %v159, %v181
          %vm183 = vcmask 0
          %184 = vst.msk [vmem:[#allocation3] sm:$0x1] %vm183, %v182
          %185 = vst.msk [vmem:[#allocation2] sm:$0x1] %vm183, %v154
        $region36: #{tpu_custom_call.1} parent=23 // pred_fallthru
          _
        %p186 = scmp.eq.s32.totalorder %s20, 1
        // Predicated region
        $region37: #{tpu_custom_call.1} parent=23 // pred_check
          %p187 = pneg %p186
        $region38: #{tpu_custom_call.1} parent=23 // pred_check_branch
          %189 = sbr.rel (%p187) target = $region40
        $region39: #{tpu_custom_call.1} parent=23 // pred_region
          %v190 = vld [vmem:[#allocation4] sm:$0xff]
          %v191 = vld [vmem:[#allocation2] sm:$0x1]
          %v193 = vlaneseq
          %v194 = vshrl.u32 %v193, 7
          %v195 = vsub.s32 0, %v194
          %v196 = vrot.slane %v191, %v195
          %197 = vset.pattern.permute.xlu0 0
          %198 = vperm.xlu0 %197, %v196
          %v199 = vpop.permute.xlu0 %198
          %v201 = vsub.f32 %v190, %v199
          %v202 = vmul.f32 %v201, 1.442695
          %v203 = vpow.pop %v202
          %v204 = vld [vmem:[#allocation3] sm:$0x1]
          %v205 = vrcp.pop %v204
          %v206 = vmul.f32 %v204, %v205
          %v207 = vsub.f32 2.0, %v206
          %v208 = vmul.f32 %v205, %v207
          %v210 = vlaneseq
          %v211 = vshrl.u32 %v210, 7
          %v212 = vsub.s32 0, %v211
          %v213 = vrot.slane %v208, %v212
          %214 = vset.pattern.permute.xlu0 0
          %215 = vperm.xlu0 %214, %v213
          %v216 = vpop.permute.xlu0 %215
          %v218 = vmul.f32 %v203, %v216
          %219 = vst [vmem:[%s128] sm:$0xff] %v218
        $region40: #{tpu_custom_call.1} parent=23 // pred_fallthru
          _
        %s220 = sand.u32 %s64, 1
        %s221 = scalar_lea.sflag [#allocation6], %s220
        %s222 = sand.u32 %s64, 1
        %s223 = smul.addr %s222, 8
        %s224 = scalar_lea.vmem [#allocation7], %s223
        // Predicated region
        $region41: #{tpu_custom_call.1} parent=23 // pred_check
          %p225 = pneg %p74
        $region42: #{tpu_custom_call.1} parent=23 // pred_check_branch
          %227 = sbr.rel (%p225) target = $region44
        $region43: #{tpu_custom_call.1} parent=23 // pred_region
          %s228 = smul.u32 %s21, %s20
          %s230 = ssub.s32 128, 128
          %231 = vsyncadd %s221, %s230
          %s232 = smul.addr %s228, 128
          %s233 = scalar_lea.hbm %s1, %s232
          %s235 = sshll.u32 %s224, 4
          %s236 = int_to_ptr.vmem [resolvable:$true] %s235
          %238 = dma.vmem_to_hbm [thread:$0]  %s236, 128, %s233, %s221
        $region44: #{tpu_custom_call.1} parent=23 // pred_fallthru
          _
      $region24: #{tpu_custom_call.1} parent=5 // pred_fallthru
        _
      %p239 = scmp.le.s32.totalorder 2, %s11
      // Predicated region
      $region45: #{tpu_custom_call.1} parent=5 // pred_check
        %p240 = pneg %p239
      $region46: #{tpu_custom_call.1} parent=5 // pred_check_branch
        %242 = sbr.rel (%p240) target = $region48
      $region47: #{tpu_custom_call.1} parent=5 // pred_region
        %s243 = ssub.s32 %s11, 2
        // Predicated region
        $region49: #{tpu_custom_call.1} parent=47 // pred_check
          %p244 = pneg %p80
        $region50: #{tpu_custom_call.1} parent=47 // pred_check_branch
          %246 = sbr.rel (%p244) target = $region52
        $region51: #{tpu_custom_call.1} parent=47 // pred_region
          %s247 = sand.u32 %s65, 1
          %s248 = scalar_lea.sflag [#allocation6], %s247
          %s249 = sand.u32 %s65, 1
          %s250 = smul.addr %s249, 8
          %s251 = scalar_lea.vmem [#allocation7], %s250
          %252 = dma.done %s248, 128
        $region52: #{tpu_custom_call.1} parent=47 // pred_fallthru
          _
      $region48: #{tpu_custom_call.1} parent=5 // pred_fallthru
        _
    $region6: #{tpu_custom_call.1} parent=1 // loop_footer
      %s15 = sadd.s32 1, %s11
    $region7: #{tpu_custom_call.1} parent=1 // loop_footer_branch
      %10 = sbr.rel target = $region3
    $region8: #{tpu_custom_call.1} parent=1 // loop_exit
      _
    %253 = vsyncpa [#allocation5], 1
    %s254 = scalar_lea.sflag [#allocation5], 1
    %255 = vsyncpa %s254, 1
    %256 = vsyncpa [#allocation6], 1
    %s257 = scalar_lea.sflag [#allocation6], 1
    %258 = vsyncpa %s257, 1

</llo_original>
